<compile_context>
chip_gen: v6e
topology: v6e:2x2x1
jax: 0.10.0
libtpu: 0.0.40
codegen_flags: <defaults>
</compile_context>

<pallas_src>
import functools

import jax
import jax.numpy as jnp
from jax.experimental import pallas as pl
from jax.experimental.pallas import tpu as pltpu

_LANE = 128  # vreg lane width

try:
    _VMEM_CAP = int(pltpu.get_tpu_info().vmem_capacity_bytes)
except Exception:  # pragma: no cover - fall back to the smallest (v7x) budget
    _VMEM_CAP = 64 << 20


def _round_up(v, m):
    return (v + m - 1) // m * m


def _mlp_kernel(x_ref, w1_ref, b1_ref, w2_ref, b2_ref, o_ref):
    # x_ref:  (TM, D_in)      f32     w1_ref: (D_in, Dh_p)  bf16   b1_ref: (1, Dh_p) f32
    # w2_ref: (Dh_p, Do_p)    bf16    b2_ref: (1, Do_p)     f32    o_ref:  (TM, Do_p) bf16
    x = x_ref[...].astype(jnp.bfloat16)          # in-register cast, no extra HBM pass
    # layer_input: Linear(dim_in, dim_hidden) — bf16 MXU operands, f32 accumulation.
    h = jnp.dot(x, w1_ref[...], preferred_element_type=jnp.float32) + b1_ref[...]
    # dropout: identity in eval/inference mode.
    # TODO(synk): training-mode dropout (Bernoulli mask via pltpu.prng_*) not wired in.
    h = jnp.maximum(h, 0.0)                      # f32 relu on the VPU (v5e-safe)
    # header: Linear(dim_hidden, dim_out) — activations re-cast to bf16 for the MXU.
    out = jnp.dot(h.astype(jnp.bfloat16), w2_ref[...],
                  preferred_element_type=jnp.float32) + b2_ref[...]
    o_ref[...] = out.astype(o_ref.dtype)         # bf16 store -> halved write traffic


def _tiling_plan(n, dim_in, d_hid_p, d_out_p):
    """Static (trace-time) batch-tile / VMEM-limit derivation."""
    # Resident (single-buffered) bf16 weights + f32 biases.
    resident = (dim_in * d_hid_p + d_hid_p * d_out_p) * 2 + (d_hid_p + d_out_p) * 4
    # Streaming bytes per batch row: f32 x (double-buffered) + bf16 out (double-buffered).
    per_row = 2 * dim_in * 4 + 2 * d_out_p * 2
    budget = min(int(_VMEM_CAP * 0.7), 100 << 20)
    avail = max(budget - resident - (4 << 20), per_row * 8)
    tm_cap = max(8, min(1024, avail // per_row))
    tm_cap = tm_cap // 256 * 256 if tm_cap >= 256 else max(8, tm_cap // 8 * 8)

    if n <= 256 and n <= tm_cap:
        tm = n                                            # single full-batch block
    elif n <= 2 * tm_cap:
        tm = min(_round_up((n + 1) // 2, 16), tm_cap)     # 2 balanced blocks -> megacore
    else:
        tm = tm_cap

    need = resident + per_row * tm + (8 << 20)
    vmem_limit = int(min(max(need, 32 << 20), int(_VMEM_CAP * 0.9)))
    return tm, vmem_limit


@jax.jit
def mlp_forward(x_nchw, w1, b1, w2, b2):
    n = x_nchw.shape[0]
    dim_in = x_nchw.shape[1] * x_nchw.shape[-2] * x_nchw.shape[-1]
    x2d = x_nchw.reshape(n, dim_in).astype(jnp.float32)   # x.view(-1, C*H*W)
    dim_hid = w1.shape[1]
    dim_out = w2.shape[1]

    # Lane-dense zero padding of the tiny, static feature dims (math unchanged).
    d_hid_p = _round_up(dim_hid, _LANE)
    d_out_p = _round_up(dim_out, _LANE)
    tm, vmem_limit = _tiling_plan(n, dim_in, d_hid_p, d_out_p)
    grid_m = pl.cdiv(n, tm)

    w1_p = jnp.pad(w1, ((0, 0), (0, d_hid_p - dim_hid))).astype(jnp.bfloat16)
    b1_p = jnp.pad(b1, ((0, d_hid_p - dim_hid),)).reshape(1, d_hid_p).astype(jnp.float32)
    w2_p = jnp.pad(w2, ((0, d_hid_p - dim_hid), (0, d_out_p - dim_out))).astype(jnp.bfloat16)
    b2_p = jnp.pad(b2, ((0, d_out_p - dim_out),)).reshape(1, d_out_p).astype(jnp.float32)

    cost = pl.CostEstimate(
        flops=2 * n * dim_in * d_hid_p + 2 * n * d_hid_p * d_out_p,
        transcendentals=0,
        bytes_accessed=(x2d.size * 4 + w1_p.size * 2 + w2_p.size * 2
                        + b1_p.size * 4 + b2_p.size * 4 + n * d_out_p * 2),
    )

    # Resident operands: constant index_map + single-buffered (halves their VMEM).
    resident_spec = functools.partial(pl.BlockSpec, pipeline_mode=pl.Buffered(1))

    out_p = pl.pallas_call(
        _mlp_kernel,
        out_shape=jax.ShapeDtypeStruct((n, d_out_p), jnp.bfloat16),
        grid=(grid_m,),
        in_specs=[
            pl.BlockSpec((tm, dim_in), lambda i: (i, 0)),          # x: streams per batch tile
            resident_spec((dim_in, d_hid_p), lambda i: (0, 0)),    # w1: resident
            resident_spec((1, d_hid_p), lambda i: (0, 0)),         # b1: resident
            resident_spec((d_hid_p, d_out_p), lambda i: (0, 0)),   # w2: resident
            resident_spec((1, d_out_p), lambda i: (0, 0)),         # b2: resident
        ],
        out_specs=pl.BlockSpec((tm, d_out_p), lambda i: (i, 0)),
        compiler_params=pltpu.CompilerParams(
            dimension_semantics=("parallel",),                     # megacore on v7x
            vmem_limit_bytes=vmem_limit),
        cost_estimate=cost,
    )(x2d, w1_p, b1_p, w2_p, b2_p)

    # Logical (N, dim_out) result, back to f32 to match the PyTorch module's dtype.
    return out_p[:, :dim_out].astype(jnp.float32)


def init_linear_params(key, fan_in, fan_out):
    """Deterministic init matching nn.Linear's U(-1/sqrt(fan_in), 1/sqrt(fan_in))."""
    k_w, k_b = jax.random.split(key)
    bound = 1.0 / jnp.sqrt(fan_in)
    # stored as (fan_in, fan_out) == torch weight.T
    w = jax.random.uniform(k_w, (fan_in, fan_out), jnp.float32, -bound, bound)
    b = jax.random.uniform(k_b, (fan_out,), jnp.float32, -bound, bound)
    return w, b


if __name__ == "__main__":
    key = jax.random.PRNGKey(0)
    k_x, k_l1, k_l2 = jax.random.split(key, 3)

    # Small, module-consistent shapes: x is (N, C, H, W); dim_in = C*H*W.
    N, C, H, W = 2, 4, 16, 16
    dim_in = C * H * W          # 1024
    dim_hidden = 32
    dim_out = 10

    x = jax.random.normal(k_x, (N, C, H, W), jnp.float32)
    w1, b1 = init_linear_params(k_l1, dim_in, dim_hidden)
    w2, b2 = init_linear_params(k_l2, dim_hidden, dim_out)

    out = mlp_forward(x, w1, b1, w2, b2)
    jax.block_until_ready(out)

    # Reference check in plain JAX f32 (eval-mode dropout == identity).  Loose
    # tolerance accounts for bf16 MXU operands / bf16 output (f32 accumulation).
    x2d = x.reshape(N, dim_in)
    ref = jnp.maximum(x2d @ w1 + b1, 0.0) @ w2 + b2
    assert out.shape == (N, dim_out)
    assert jnp.allclose(out, ref, atol=5e-2, rtol=5e-2), float(jnp.max(jnp.abs(out - ref)))

    print("KERNEL_OK")
</pallas_src>

<mosaic_0001>
module attributes {stable_mosaic.version = 11 : i64} {
  func.func @_mlp_kernel(%arg0: i32, %arg1: memref<2x1024xf32, #tpu.memory_space<vmem>>, %arg2: memref<1024x128xbf16, #tpu.memory_space<vmem>>, %arg3: memref<1x128xf32, #tpu.memory_space<vmem>>, %arg4: memref<128x128xbf16, #tpu.memory_space<vmem>>, %arg5: memref<1x128xf32, #tpu.memory_space<vmem>>, %arg6: memref<2x128xbf16, #tpu.memory_space<vmem>>) attributes {dimension_semantics = [#tpu.dimension_semantics<parallel>], iteration_bounds = array<i64: 1>, scalar_prefetch = 0 : i64, scratch_operands = 0 : i64, tpu.core_type = #tpu.core_type<tc>, window_params = [{transform_indices = @transform_0, window_bounds = array<i64: 2, 1024>}, {pipeline_mode = #tpu.pipeline_mode<synchronous>, transform_indices = @transform_1, window_bounds = array<i64: 1024, 128>}, {pipeline_mode = #tpu.pipeline_mode<synchronous>, transform_indices = @transform_2, window_bounds = array<i64: 1, 128>}, {pipeline_mode = #tpu.pipeline_mode<synchronous>, transform_indices = @transform_3, window_bounds = array<i64: 128, 128>}, {pipeline_mode = #tpu.pipeline_mode<synchronous>, transform_indices = @transform_4, window_bounds = array<i64: 1, 128>}, {transform_indices = @transform_5, window_bounds = array<i64: 2, 128>}]} {
    %c0 = arith.constant 0 : index
    %c0_0 = arith.constant 0 : index
    %0 = vector.load %arg1[%c0, %c0_0] : memref<2x1024xf32, #tpu.memory_space<vmem>>, vector<2x1024xf32>
    %1 = arith.truncf %0 : vector<2x1024xf32> to vector<2x1024xbf16>
    %c0_1 = arith.constant 0 : index
    %c0_2 = arith.constant 0 : index
    %2 = vector.load %arg2[%c0_1, %c0_2] : memref<1024x128xbf16, #tpu.memory_space<vmem>>, vector<1024x128xbf16>
    %cst = arith.constant dense<0.000000e+00> : vector<2x128xf32>
    %3 = tpu.matmul %1, %2, %cst {dimension_numbers = #tpu.dot_dimension_numbers<[1], [0], [0], [1], [0, 0, 1, 1], [], []>} : vector<2x1024xbf16>, vector<1024x128xbf16>, vector<2x128xf32> -> vector<2x128xf32>
    %c0_3 = arith.constant 0 : index
    %c0_4 = arith.constant 0 : index
    %4 = vector.load %arg3[%c0_3, %c0_4] : memref<1x128xf32, #tpu.memory_space<vmem>>, vector<1x128xf32>
    %5 = vector.broadcast %4 : vector<1x128xf32> to vector<2x128xf32>
    %6 = arith.addf %3, %5 : vector<2x128xf32>
    %cst_5 = arith.constant 0.000000e+00 : f32
    %7 = vector.broadcast %cst_5 : f32 to vector<2x128xf32>
    %8 = arith.maximumf %6, %7 : vector<2x128xf32>
    %9 = arith.truncf %8 : vector<2x128xf32> to vector<2x128xbf16>
    %c0_6 = arith.constant 0 : index
    %c0_7 = arith.constant 0 : index
    %10 = vector.load %arg4[%c0_6, %c0_7] : memref<128x128xbf16, #tpu.memory_space<vmem>>, vector<128x128xbf16>
    %cst_8 = arith.constant dense<0.000000e+00> : vector<2x128xf32>
    %11 = tpu.matmul %9, %10, %cst_8 {dimension_numbers = #tpu.dot_dimension_numbers<[1], [0], [0], [1], [0, 0, 1, 1], [], []>} : vector<2x128xbf16>, vector<128x128xbf16>, vector<2x128xf32> -> vector<2x128xf32>
    %c0_9 = arith.constant 0 : index
    %c0_10 = arith.constant 0 : index
    %12 = vector.load %arg5[%c0_9, %c0_10] : memref<1x128xf32, #tpu.memory_space<vmem>>, vector<1x128xf32>
    %13 = vector.broadcast %12 : vector<1x128xf32> to vector<2x128xf32>
    %14 = arith.addf %11, %13 : vector<2x128xf32>
    %15 = arith.truncf %14 : vector<2x128xf32> to vector<2x128xbf16>
    %c0_11 = arith.constant 0 : index
    %c0_12 = arith.constant 0 : index
    %16 = vector.load %arg6[%c0_11, %c0_12] : memref<2x128xbf16, #tpu.memory_space<vmem>>, vector<2x128xbf16>
    tpu.vector_store %arg6[%c0_11, %c0_12], %15 {strides = array<i32>} : memref<2x128xbf16, #tpu.memory_space<vmem>>, vector<2x128xbf16>,
    return
  }
  func.func @transform_0(%arg0: i32) -> (i32, i32) {
    %c0_i32 = arith.constant 0 : i32
    %c0_i32_0 = arith.constant 0 : i32
    return %arg0, %c0_i32 : i32, i32
  }
  func.func @transform_1(%arg0: i32) -> (i32, i32) {
    %c0_i32 = arith.constant 0 : i32
    %c0_i32_0 = arith.constant 0 : i32
    %c0_i32_1 = arith.constant 0 : i32
    return %c0_i32, %c0_i32_0 : i32, i32
  }
  func.func @transform_2(%arg0: i32) -> (i32, i32) {
    %c0_i32 = arith.constant 0 : i32
    %c0_i32_0 = arith.constant 0 : i32
    %c0_i32_1 = arith.constant 0 : i32
    return %c0_i32, %c0_i32_0 : i32, i32
  }
  func.func @transform_3(%arg0: i32) -> (i32, i32) {
    %c0_i32 = arith.constant 0 : i32
    %c0_i32_0 = arith.constant 0 : i32
    %c0_i32_1 = arith.constant 0 : i32
    return %c0_i32, %c0_i32_0 : i32, i32
  }
  func.func @transform_4(%arg0: i32) -> (i32, i32) {
    %c0_i32 = arith.constant 0 : i32
    %c0_i32_0 = arith.constant 0 : i32
    %c0_i32_1 = arith.constant 0 : i32
    return %c0_i32, %c0_i32_0 : i32, i32
  }
  func.func @transform_5(%arg0: i32) -> (i32, i32) {
    %c0_i32 = arith.constant 0 : i32
    %c0_i32_0 = arith.constant 0 : i32
    return %arg0, %c0_i32 : i32, i32
  }
}

</mosaic_0001>

<llo_original>
// kernel: mlp_forward.1
$region0: #{mlp_forward.1}
  #allocation0 [shape = 'u32[]', space=smem, size = 0x4, offset = 0x4, fixed_abs, tag = 'smem constant byte address 0x4 - core index']
  #allocation1 [shape = 'u32[144,128]{1,0:T(1,128)}', space=vmem, size = 0x12000, scoped, tag = 'internal scratch']
  %s0 = inlined_call_operand.vmem [shape: f32[2,1024], index: 0, kind: input, shape index: {}]
  %s1 = inlined_call_operand.vmem [shape: bf16[1024,128], index: 1, kind: input, shape index: {}]
  %s2 = inlined_call_operand.vmem [shape: f32[1,128], index: 2, kind: input, shape index: {}]
  %s3 = inlined_call_operand.vmem [shape: bf16[128,128], index: 3, kind: input, shape index: {}]
  %s4 = inlined_call_operand.vmem [shape: f32[1,128], index: 4, kind: input, shape index: {}]
  %s5 = inlined_call_operand.vmem [shape: bf16[2,128], index: 5, kind: output, shape index: {}]
  %s6 = sld [smem:[#allocation0]]
  $region30: #{mlp_forward.1} parent=0
    _
  %s8 = ssub.s32 1, %s6
  %s9 = scalar_select 0, %s8, %s6
  // Predicated region
  $region2: #{mlp_forward.1} parent=0 // pred_check
    _
  $region3: #{mlp_forward.1} parent=0 // pred_check_branch
    %11 = sbr.rel (0) target = $region5
  $region4: #{mlp_forward.1} parent=0 // pred_region
    _
  $region5: #{mlp_forward.1} parent=0 // pred_fallthru
    _
  // Predicated region
  $region6: #{mlp_forward.1} parent=0 // pred_check
    _
  $region7: #{mlp_forward.1} parent=0 // pred_check_branch
    %13 = sbr.rel (0) target = $region9
  $region8: #{mlp_forward.1} parent=0 // pred_region
    _
  $region9: #{mlp_forward.1} parent=0 // pred_fallthru
    _
  // Predicated region
  $region10: #{mlp_forward.1} parent=0 // pred_check
    _
  $region11: #{mlp_forward.1} parent=0 // pred_check_branch
    %15 = sbr.rel (0) target = $region13
  $region12: #{mlp_forward.1} parent=0 // pred_region
    _
  $region13: #{mlp_forward.1} parent=0 // pred_fallthru
    _
  // Predicated region
  $region14: #{mlp_forward.1} parent=0 // pred_check
    _
  $region15: #{mlp_forward.1} parent=0 // pred_check_branch
    %17 = sbr.rel (0) target = $region17
  $region16: #{mlp_forward.1} parent=0 // pred_region
    _
  $region17: #{mlp_forward.1} parent=0 // pred_fallthru
    _
  // Predicated region
  $region18: #{mlp_forward.1} parent=0 // pred_check
    _
  $region19: #{mlp_forward.1} parent=0 // pred_check_branch
    %19 = sbr.rel (0) target = $region21
  $region20: #{mlp_forward.1} parent=0 // pred_region
    _
  $region21: #{mlp_forward.1} parent=0 // pred_fallthru
    _
  %v21 = vld [vmem:[%s0] sm:$0xff]
  %v22 = vld [vmem:[%s0 + $0x8] sm:$0xff]
  %v25 = vcombine.high %v21, %v21
  %v27 = vunpack.c.l.s4 1983009808
  %v28 = vunpack.c.0.s8 %v27
  %v29 = vlaneseq
  %v30 = vshrl.u32 %v29, 7
  %v31 = vsub.s32 %v28, %v30
  %v32 = vrot.slane %v21, %v31
  %v34 = vunpack.c.l.s4 1983009808
  %v35 = vunpack.c.0.s8 %v34
  %v36 = vlaneseq
  %v37 = vshrl.u32 %v36, 7
  %v38 = vsub.s32 %v35, %v37
  %v39 = vrot.slane %v25, %v38
  %v40 = vcombine.high %v32, %v32
  %v41 = vcombine.high %v39, %v39
  %v42 = vcombine.high %v22, %v22
  %v44 = vunpack.c.l.s4 1983009808
  %v45 = vunpack.c.0.s8 %v44
  %v46 = vlaneseq
  %v47 = vshrl.u32 %v46, 7
  %v48 = vsub.s32 %v45, %v47
  %v49 = vrot.slane %v22, %v48
  %v51 = vunpack.c.l.s4 1983009808
  %v52 = vunpack.c.0.s8 %v51
  %v53 = vlaneseq
  %v54 = vshrl.u32 %v53, 7
  %v55 = vsub.s32 %v52, %v54
  %v56 = vrot.slane %v42, %v55
  %v57 = vcombine.high %v49, %v49
  %v58 = vcombine.high %v56, %v56
  %v67 = vpack.c.bf16 %v32, %v32
  %v68 = vpack.c.bf16 %v40, %v40
  %v69 = vpack.c.bf16 %v39, %v39
  %v70 = vpack.c.bf16 %v41, %v41
  %v71 = vpack.c.bf16 %v49, %v49
  %v72 = vpack.c.bf16 %v57, %v57
  %v73 = vpack.c.bf16 %v56, %v56
  %v74 = vpack.c.bf16 %v58, %v58
  %v75 = vld [vmem:[%s1] sm:$0xf]
  %v76 = vld [vmem:[%s1 + $0x4] sm:$0xf]
  %v77 = vld [vmem:[%s1 + $0x8] sm:$0xf]
  %v78 = vld [vmem:[%s1 + $0xc] sm:$0xf]
  %v79 = vld [vmem:[%s1 + $0x10] sm:$0xf]
  %v80 = vld [vmem:[%s1 + $0x14] sm:$0xf]
  %v81 = vld [vmem:[%s1 + $0x18] sm:$0xf]
  %v82 = vld [vmem:[%s1 + $0x1c] sm:$0xf]
  %v83 = vld [vmem:[%s1 + $0x20] sm:$0xf]
  %v84 = vld [vmem:[%s1 + $0x24] sm:$0xf]
  %v85 = vld [vmem:[%s1 + $0x28] sm:$0xf]
  %v86 = vld [vmem:[%s1 + $0x2c] sm:$0xf]
  %v87 = vld [vmem:[%s1 + $0x30] sm:$0xf]
  %v88 = vld [vmem:[%s1 + $0x34] sm:$0xf]
  %v89 = vld [vmem:[%s1 + $0x38] sm:$0xf]
  %v90 = vld [vmem:[%s1 + $0x3c] sm:$0xf]
  %v91 = vld [vmem:[%s1 + $0x40] sm:$0xf]
  %v92 = vld [vmem:[%s1 + $0x44] sm:$0xf]
  %v93 = vld [vmem:[%s1 + $0x48] sm:$0xf]
  %v94 = vld [vmem:[%s1 + $0x4c] sm:$0xf]
  %v95 = vld [vmem:[%s1 + $0x50] sm:$0xf]
  %v96 = vld [vmem:[%s1 + $0x54] sm:$0xf]
  %v97 = vld [vmem:[%s1 + $0x58] sm:$0xf]
  %v98 = vld [vmem:[%s1 + $0x5c] sm:$0xf]
  %v99 = vld [vmem:[%s1 + $0x60] sm:$0xf]
  %v100 = vld [vmem:[%s1 + $0x64] sm:$0xf]
  %v101 = vld [vmem:[%s1 + $0x68] sm:$0xf]
  %v102 = vld [vmem:[%s1 + $0x6c] sm:$0xf]
  %v103 = vld [vmem:[%s1 + $0x70] sm:$0xf]
  %v104 = vld [vmem:[%s1 + $0x74] sm:$0xf]
  %v105 = vld [vmem:[%s1 + $0x78] sm:$0xf]
  %v106 = vld [vmem:[%s1 + $0x7c] sm:$0xf]
  %v107 = vld [vmem:[%s1 + $0x80] sm:$0xf]
  %v108 = vld [vmem:[%s1 + $0x84] sm:$0xf]
  %v109 = vld [vmem:[%s1 + $0x88] sm:$0xf]
  %v110 = vld [vmem:[%s1 + $0x8c] sm:$0xf]
  %v111 = vld [vmem:[%s1 + $0x90] sm:$0xf]
  %v112 = vld [vmem:[%s1 + $0x94] sm:$0xf]
  %v113 = vld [vmem:[%s1 + $0x98] sm:$0xf]
  %v114 = vld [vmem:[%s1 + $0x9c] sm:$0xf]
  %v115 = vld [vmem:[%s1 + $0xa0] sm:$0xf]
  %v116 = vld [vmem:[%s1 + $0xa4] sm:$0xf]
  %v117 = vld [vmem:[%s1 + $0xa8] sm:$0xf]
  %v118 = vld [vmem:[%s1 + $0xac] sm:$0xf]
  %v119 = vld [vmem:[%s1 + $0xb0] sm:$0xf]
  %v120 = vld [vmem:[%s1 + $0xb4] sm:$0xf]
  %v121 = vld [vmem:[%s1 + $0xb8] sm:$0xf]
  %v122 = vld [vmem:[%s1 + $0xbc] sm:$0xf]
  %v123 = vld [vmem:[%s1 + $0xc0] sm:$0xf]
  %v124 = vld [vmem:[%s1 + $0xc4] sm:$0xf]
  %v125 = vld [vmem:[%s1 + $0xc8] sm:$0xf]
  %v126 = vld [vmem:[%s1 + $0xcc] sm:$0xf]
  %v127 = vld [vmem:[%s1 + $0xd0] sm:$0xf]
  %v128 = vld [vmem:[%s1 + $0xd4] sm:$0xf]
  %v129 = vld [vmem:[%s1 + $0xd8] sm:$0xf]
  %v130 = vld [vmem:[%s1 + $0xdc] sm:$0xf]
  %v131 = vld [vmem:[%s1 + $0xe0] sm:$0xf]
  %v132 = vld [vmem:[%s1 + $0xe4] sm:$0xf]
  %v133 = vld [vmem:[%s1 + $0xe8] sm:$0xf]
  %v134 = vld [vmem:[%s1 + $0xec] sm:$0xf]
  %v135 = vld [vmem:[%s1 + $0xf0] sm:$0xf]
  %v136 = vld [vmem:[%s1 + $0xf4] sm:$0xf]
  %v137 = vld [vmem:[%s1 + $0xf8] sm:$0xf]
  %v138 = vld [vmem:[%s1 + $0xfc] sm:$0xf]
  %v139 = vld [vmem:[%s1 + $0x100] sm:$0xf]
  %v140 = vld [vmem:[%s1 + $0x104] sm:$0xf]
  %v141 = vld [vmem:[%s1 + $0x108] sm:$0xf]
  %v142 = vld [vmem:[%s1 + $0x10c] sm:$0xf]
  %v143 = vld [vmem:[%s1 + $0x110] sm:$0xf]
  %v144 = vld [vmem:[%s1 + $0x114] sm:$0xf]
  %v145 = vld [vmem:[%s1 + $0x118] sm:$0xf]
  %v146 = vld [vmem:[%s1 + $0x11c] sm:$0xf]
  %v147 = vld [vmem:[%s1 + $0x120] sm:$0xf]
  %v148 = vld [vmem:[%s1 + $0x124] sm:$0xf]
  %v149 = vld [vmem:[%s1 + $0x128] sm:$0xf]
  %v150 = vld [vmem:[%s1 + $0x12c] sm:$0xf]
  %v151 = vld [vmem:[%s1 + $0x130] sm:$0xf]
  %v152 = vld [vmem:[%s1 + $0x134] sm:$0xf]
  %v153 = vld [vmem:[%s1 + $0x138] sm:$0xf]
  %v154 = vld [vmem:[%s1 + $0x13c] sm:$0xf]
  %v155 = vld [vmem:[%s1 + $0x140] sm:$0xf]
  %v156 = vld [vmem:[%s1 + $0x144] sm:$0xf]
  %v157 = vld [vmem:[%s1 + $0x148] sm:$0xf]
  %v158 = vld [vmem:[%s1 + $0x14c] sm:$0xf]
  %v159 = vld [vmem:[%s1 + $0x150] sm:$0xf]
  %v160 = vld [vmem:[%s1 + $0x154] sm:$0xf]
  %v161 = vld [vmem:[%s1 + $0x158] sm:$0xf]
  %v162 = vld [vmem:[%s1 + $0x15c] sm:$0xf]
  %v163 = vld [vmem:[%s1 + $0x160] sm:$0xf]
  %v164 = vld [vmem:[%s1 + $0x164] sm:$0xf]
  %v165 = vld [vmem:[%s1 + $0x168] sm:$0xf]
  %v166 = vld [vmem:[%s1 + $0x16c] sm:$0xf]
  %v167 = vld [vmem:[%s1 + $0x170] sm:$0xf]
  %v168 = vld [vmem:[%s1 + $0x174] sm:$0xf]
  %v169 = vld [vmem:[%s1 + $0x178] sm:$0xf]
  %v170 = vld [vmem:[%s1 + $0x17c] sm:$0xf]
  %v171 = vld [vmem:[%s1 + $0x180] sm:$0xf]
  %v172 = vld [vmem:[%s1 + $0x184] sm:$0xf]
  %v173 = vld [vmem:[%s1 + $0x188] sm:$0xf]
  %v174 = vld [vmem:[%s1 + $0x18c] sm:$0xf]
  %v175 = vld [vmem:[%s1 + $0x190] sm:$0xf]
  %v176 = vld [vmem:[%s1 + $0x194] sm:$0xf]
  %v177 = vld [vmem:[%s1 + $0x198] sm:$0xf]
  %v178 = vld [vmem:[%s1 + $0x19c] sm:$0xf]
  %v179 = vld [vmem:[%s1 + $0x1a0] sm:$0xf]
  %v180 = vld [vmem:[%s1 + $0x1a4] sm:$0xf]
  %v181 = vld [vmem:[%s1 + $0x1a8] sm:$0xf]
  %v182 = vld [vmem:[%s1 + $0x1ac] sm:$0xf]
  %v183 = vld [vmem:[%s1 + $0x1b0] sm:$0xf]
  %v184 = vld [vmem:[%s1 + $0x1b4] sm:$0xf]
  %v185 = vld [vmem:[%s1 + $0x1b8] sm:$0xf]
  %v186 = vld [vmem:[%s1 + $0x1bc] sm:$0xf]
  %v187 = vld [vmem:[%s1 + $0x1c0] sm:$0xf]
  %v188 = vld [vmem:[%s1 + $0x1c4] sm:$0xf]
  %v189 = vld [vmem:[%s1 + $0x1c8] sm:$0xf]
  %v190 = vld [vmem:[%s1 + $0x1cc] sm:$0xf]
  %v191 = vld [vmem:[%s1 + $0x1d0] sm:$0xf]
  %v192 = vld [vmem:[%s1 + $0x1d4] sm:$0xf]
  %v193 = vld [vmem:[%s1 + $0x1d8] sm:$0xf]
  %v194 = vld [vmem:[%s1 + $0x1dc] sm:$0xf]
  %v195 = vld [vmem:[%s1 + $0x1e0] sm:$0xf]
  %v196 = vld [vmem:[%s1 + $0x1e4] sm:$0xf]
  %v197 = vld [vmem:[%s1 + $0x1e8] sm:$0xf]
  %v198 = vld [vmem:[%s1 + $0x1ec] sm:$0xf]
  %v199 = vld [vmem:[%s1 + $0x1f0] sm:$0xf]
  %v200 = vld [vmem:[%s1 + $0x1f4] sm:$0xf]
  %v201 = vld [vmem:[%s1 + $0x1f8] sm:$0xf]
  %v202 = vld [vmem:[%s1 + $0x1fc] sm:$0xf]
  %v203 = vld [vmem:[%s2] sm:$0x1]
  %v205 = vlaneseq
  %v206 = vshrl.u32 %v205, 7
  %v207 = vsub.s32 0, %v206
  %v208 = vrot.slane %v203, %v207
  %v338 = vunpack.c.l.b16 %v75
  %v339 = vunpack.c.l.b16 %v76
  %v340 = vunpack.c.l.b16 %v77
  %v341 = vunpack.c.l.b16 %v78
  %v342 = vunpack.c.l.b16 %v79
  %v343 = vunpack.c.l.b16 %v80
  %v344 = vunpack.c.l.b16 %v81
  %v345 = vunpack.c.l.b16 %v82
  %v346 = vunpack.c.l.b16 %v83
  %v347 = vunpack.c.l.b16 %v84
  %v348 = vunpack.c.l.b16 %v85
  %v349 = vunpack.c.l.b16 %v86
  %v350 = vunpack.c.l.b16 %v87
  %v351 = vunpack.c.l.b16 %v88
  %v352 = vunpack.c.l.b16 %v89
  %v353 = vunpack.c.l.b16 %v90
  %v354 = vunpack.c.l.b16 %v91
  %v355 = vunpack.c.l.b16 %v92
  %v356 = vunpack.c.l.b16 %v93
  %v357 = vunpack.c.l.b16 %v94
  %v358 = vunpack.c.l.b16 %v95
  %v359 = vunpack.c.l.b16 %v96
  %v360 = vunpack.c.l.b16 %v97
  %v361 = vunpack.c.l.b16 %v98
  %v362 = vunpack.c.l.b16 %v99
  %v363 = vunpack.c.l.b16 %v100
  %v364 = vunpack.c.l.b16 %v101
  %v365 = vunpack.c.l.b16 %v102
  %v366 = vunpack.c.l.b16 %v103
  %v367 = vunpack.c.l.b16 %v104
  %v368 = vunpack.c.l.b16 %v105
  %v369 = vunpack.c.l.b16 %v106
  %v370 = vunpack.c.l.b16 %v107
  %v371 = vunpack.c.l.b16 %v108
  %v372 = vunpack.c.l.b16 %v109
  %v373 = vunpack.c.l.b16 %v110
  %v374 = vunpack.c.l.b16 %v111
  %v375 = vunpack.c.l.b16 %v112
  %v376 = vunpack.c.l.b16 %v113
  %v377 = vunpack.c.l.b16 %v114
  %v378 = vunpack.c.l.b16 %v115
  %v379 = vunpack.c.l.b16 %v116
  %v380 = vunpack.c.l.b16 %v117
  %v381 = vunpack.c.l.b16 %v118
  %v382 = vunpack.c.l.b16 %v119
  %v383 = vunpack.c.l.b16 %v120
  %v384 = vunpack.c.l.b16 %v121
  %v385 = vunpack.c.l.b16 %v122
  %v386 = vunpack.c.l.b16 %v123
  %v387 = vunpack.c.l.b16 %v124
  %v388 = vunpack.c.l.b16 %v125
  %v389 = vunpack.c.l.b16 %v126
  %v390 = vunpack.c.l.b16 %v127
  %v391 = vunpack.c.l.b16 %v128
  %v392 = vunpack.c.l.b16 %v129
  %v393 = vunpack.c.l.b16 %v130
  %v394 = vunpack.c.l.b16 %v131
  %v395 = vunpack.c.l.b16 %v132
  %v396 = vunpack.c.l.b16 %v133
  %v397 = vunpack.c.l.b16 %v134
  %v398 = vunpack.c.l.b16 %v135
  %v399 = vunpack.c.l.b16 %v136
  %v400 = vunpack.c.l.b16 %v137
  %v401 = vunpack.c.l.b16 %v138
  %v402 = vunpack.c.l.b16 %v139
  %v403 = vunpack.c.l.b16 %v140
  %v404 = vunpack.c.l.b16 %v141
  %v405 = vunpack.c.l.b16 %v142
  %v406 = vunpack.c.l.b16 %v143
  %v407 = vunpack.c.l.b16 %v144
  %v408 = vunpack.c.l.b16 %v145
  %v409 = vunpack.c.l.b16 %v146
  %v410 = vunpack.c.l.b16 %v147
  %v411 = vunpack.c.l.b16 %v148
  %v412 = vunpack.c.l.b16 %v149
  %v413 = vunpack.c.l.b16 %v150
  %v414 = vunpack.c.l.b16 %v151
  %v415 = vunpack.c.l.b16 %v152
  %v416 = vunpack.c.l.b16 %v153
  %v417 = vunpack.c.l.b16 %v154
  %v418 = vunpack.c.l.b16 %v155
  %v419 = vunpack.c.l.b16 %v156
  %v420 = vunpack.c.l.b16 %v157
  %v421 = vunpack.c.l.b16 %v158
  %v422 = vunpack.c.l.b16 %v159
  %v423 = vunpack.c.l.b16 %v160
  %v424 = vunpack.c.l.b16 %v161
  %v425 = vunpack.c.l.b16 %v162
  %v426 = vunpack.c.l.b16 %v163
  %v427 = vunpack.c.l.b16 %v164
  %v428 = vunpack.c.l.b16 %v165
  %v429 = vunpack.c.l.b16 %v166
  %v430 = vunpack.c.l.b16 %v167
  %v431 = vunpack.c.l.b16 %v168
  %v432 = vunpack.c.l.b16 %v169
  %v433 = vunpack.c.l.b16 %v170
  %v434 = vunpack.c.l.b16 %v171
  %v435 = vunpack.c.l.b16 %v172
  %v436 = vunpack.c.l.b16 %v173
  %v437 = vunpack.c.l.b16 %v174
  %v438 = vunpack.c.l.b16 %v175
  %v439 = vunpack.c.l.b16 %v176
  %v440 = vunpack.c.l.b16 %v177
  %v441 = vunpack.c.l.b16 %v178
  %v442 = vunpack.c.l.b16 %v179
  %v443 = vunpack.c.l.b16 %v180
  %v444 = vunpack.c.l.b16 %v181
  %v445 = vunpack.c.l.b16 %v182
  %v446 = vunpack.c.l.b16 %v183
  %v447 = vunpack.c.l.b16 %v184
  %v448 = vunpack.c.l.b16 %v185
  %v449 = vunpack.c.l.b16 %v186
  %v450 = vunpack.c.l.b16 %v187
  %v451 = vunpack.c.l.b16 %v188
  %v452 = vunpack.c.l.b16 %v189
  %v453 = vunpack.c.l.b16 %v190
  %v454 = vunpack.c.l.b16 %v191
  %v455 = vunpack.c.l.b16 %v192
  %v456 = vunpack.c.l.b16 %v193
  %v457 = vunpack.c.l.b16 %v194
  %v458 = vunpack.c.l.b16 %v195
  %v459 = vunpack.c.l.b16 %v196
  %v460 = vunpack.c.l.b16 %v197
  %v461 = vunpack.c.l.b16 %v198
  %v462 = vunpack.c.l.b16 %v199
  %v463 = vunpack.c.l.b16 %v200
  %v464 = vunpack.c.l.b16 %v201
  %v465 = vunpack.c.l.b16 %v202
  %v466 = vpack.c.b16 %v339, %v338
  %v467 = vpack.c.b16 %v341, %v340
  %v468 = vpack.c.b16 %v343, %v342
  %v469 = vpack.c.b16 %v345, %v344
  %v470 = vpack.c.b16 %v347, %v346
  %v471 = vpack.c.b16 %v349, %v348
  %v472 = vpack.c.b16 %v351, %v350
  %v473 = vpack.c.b16 %v353, %v352
  %v474 = vpack.c.b16 %v355, %v354
  %v475 = vpack.c.b16 %v357, %v356
  %v476 = vpack.c.b16 %v359, %v358
  %v477 = vpack.c.b16 %v361, %v360
  %v478 = vpack.c.b16 %v363, %v362
  %v479 = vpack.c.b16 %v365, %v364
  %v480 = vpack.c.b16 %v367, %v366
  %v481 = vpack.c.b16 %v369, %v368
  %v482 = vpack.c.b16 %v371, %v370
  %v483 = vpack.c.b16 %v373, %v372
  %v484 = vpack.c.b16 %v375, %v374
  %v485 = vpack.c.b16 %v377, %v376
  %v486 = vpack.c.b16 %v379, %v378
  %v487 = vpack.c.b16 %v381, %v380
  %v488 = vpack.c.b16 %v383, %v382
  %v489 = vpack.c.b16 %v385, %v384
  %v490 = vpack.c.b16 %v387, %v386
  %v491 = vpack.c.b16 %v389, %v388
  %v492 = vpack.c.b16 %v391, %v390
  %v493 = vpack.c.b16 %v393, %v392
  %v494 = vpack.c.b16 %v395, %v394
  %v495 = vpack.c.b16 %v397, %v396
  %v496 = vpack.c.b16 %v399, %v398
  %v497 = vpack.c.b16 %v401, %v400
  %v498 = vpack.c.b16 %v403, %v402
  %v499 = vpack.c.b16 %v405, %v404
  %v500 = vpack.c.b16 %v407, %v406
  %v501 = vpack.c.b16 %v409, %v408
  %v502 = vpack.c.b16 %v411, %v410
  %v503 = vpack.c.b16 %v413, %v412
  %v504 = vpack.c.b16 %v415, %v414
  %v505 = vpack.c.b16 %v417, %v416
  %v506 = vpack.c.b16 %v419, %v418
  %v507 = vpack.c.b16 %v421, %v420
  %v508 = vpack.c.b16 %v423, %v422
  %v509 = vpack.c.b16 %v425, %v424
  %v510 = vpack.c.b16 %v427, %v426
  %v511 = vpack.c.b16 %v429, %v428
  %v512 = vpack.c.b16 %v431, %v430
  %v513 = vpack.c.b16 %v433, %v432
  %v514 = vpack.c.b16 %v435, %v434
  %v515 = vpack.c.b16 %v437, %v436
  %v516 = vpack.c.b16 %v439, %v438
  %v517 = vpack.c.b16 %v441, %v440
  %v518 = vpack.c.b16 %v443, %v442
  %v519 = vpack.c.b16 %v445, %v444
  %v520 = vpack.c.b16 %v447, %v446
  %v521 = vpack.c.b16 %v449, %v448
  %v522 = vpack.c.b16 %v451, %v450
  %v523 = vpack.c.b16 %v453, %v452
  %v524 = vpack.c.b16 %v455, %v454
  %v525 = vpack.c.b16 %v457, %v456
  %v526 = vpack.c.b16 %v459, %v458
  %v527 = vpack.c.b16 %v461, %v460
  %v528 = vpack.c.b16 %v463, %v462
  %v529 = vpack.c.b16 %v465, %v464
  %594 = vmatprep.subr.bf16.mxu0 0
  %595 = vmatpush1.bf16.msra.mxu0 %v473
  %596 = vmatprep.subr.bf16.mxu0 0
  %597 = vmatpush1.bf16.msra.mxu0 %v472
  %598 = vmatprep.subr.bf16.mxu0 0
  %599 = vmatpush1.bf16.msra.mxu0 %v471
  %600 = vmatprep.subr.bf16.mxu0 0
  %601 = vmatpush1.bf16.msra.mxu0 %v470
  %602 = vmatprep.subr.bf16.mxu0 0
  %603 = vmatpush1.bf16.msra.mxu0 %v469
  %604 = vmatprep.subr.bf16.mxu0 0
  %605 = vmatpush1.bf16.msra.mxu0 %v468
  %606 = vmatprep.subr.bf16.mxu0 0
  %607 = vmatpush1.bf16.msra.mxu0 %v467
  %608 = vmatprep.subr.bf16.mxu0 0
  %609 = vmatpush1.bf16.msra.mxu0 %v466
  %610 = vmatprep.subr.bf16.mxu0 0
  %611 = vmatpush2.bf16.msra.mxu0 %v481
  %612 = vmatprep.subr.bf16.mxu0 0
  %613 = vmatpush2.bf16.msra.mxu0 %v480
  %614 = vmatprep.subr.bf16.mxu0 0
  %615 = vmatpush2.bf16.msra.mxu0 %v479
  %616 = vmatprep.subr.bf16.mxu0 0
  %617 = vmatpush2.bf16.msra.mxu0 %v478
  %618 = vmatprep.subr.bf16.mxu0 0
  %619 = vmatpush2.bf16.msra.mxu0 %v477
  %620 = vmatprep.subr.bf16.mxu0 0
  %621 = vmatpush2.bf16.msra.mxu0 %v476
  %622 = vmatprep.subr.bf16.mxu0 0
  %623 = vmatpush2.bf16.msra.mxu0 %v475
  %624 = vmatprep.subr.bf16.mxu0 0
  %625 = vmatpush2.bf16.msra.mxu0 %v474
  %626 = vmatprep.mubr.bf16.mxu0 %v68
  %627 = vmatmul.mubr.bf16.gmra.mxu0 %v67
  %v628 = vpop.f32.mrf.mxu0
  %v629 = vadd.f32 %v208, %v628
  %v630 = vpop.f32.mrf.mxu0
  %v631 = vpop.f32.mrf.mxu0
  %v632 = vpop.f32.mrf.mxu0
  %633 = vdwg.mxu0
  %634 = vmatprep.subr.bf16.mxu0 0
  %635 = vmatpush1.bf16.msra.mxu0 %v489
  %636 = vmatprep.subr.bf16.mxu0 0
  %637 = vmatpush1.bf16.msra.mxu0 %v488
  %638 = vmatprep.subr.bf16.mxu0 0
  %639 = vmatpush1.bf16.msra.mxu0 %v487
  %640 = vmatprep.subr.bf16.mxu0 0
  %641 = vmatpush1.bf16.msra.mxu0 %v486
  %642 = vmatprep.subr.bf16.mxu0 0
  %643 = vmatpush1.bf16.msra.mxu0 %v485
  %644 = vmatprep.subr.bf16.mxu0 0
  %645 = vmatpush1.bf16.msra.mxu0 %v484
  %646 = vmatprep.subr.bf16.mxu0 0
  %647 = vmatpush1.bf16.msra.mxu0 %v483
  %648 = vmatprep.subr.bf16.mxu0 0
  %649 = vmatpush1.bf16.msra.mxu0 %v482
  %650 = vmatprep.subr.bf16.mxu0 0
  %651 = vmatpush2.bf16.msra.mxu0 %v497
  %652 = vmatprep.subr.bf16.mxu0 0
  %653 = vmatpush2.bf16.msra.mxu0 %v496
  %654 = vmatprep.subr.bf16.mxu0 0
  %655 = vmatpush2.bf16.msra.mxu0 %v495
  %656 = vmatprep.subr.bf16.mxu0 0
  %657 = vmatpush2.bf16.msra.mxu0 %v494
  %658 = vmatprep.subr.bf16.mxu0 0
  %659 = vmatpush2.bf16.msra.mxu0 %v493
  %660 = vmatprep.subr.bf16.mxu0 0
  %661 = vmatpush2.bf16.msra.mxu0 %v492
  %662 = vmatprep.subr.bf16.mxu0 0
  %663 = vmatpush2.bf16.msra.mxu0 %v491
  %664 = vmatprep.subr.bf16.mxu0 0
  %665 = vmatpush2.bf16.msra.mxu0 %v490
  %666 = vmatprep.mubr.bf16.mxu0 %v70
  %667 = vmatmul.mubr.bf16.gmra.mxu0 %v69
  %v668 = vpop.f32.mrf.mxu0
  %v669 = vadd.f32 %v629, %v668
  %v670 = vpop.f32.mrf.mxu0
  %v671 = vpop.f32.mrf.mxu0
  %v672 = vpop.f32.mrf.mxu0
  %673 = vdwg.mxu0
  %674 = vmatprep.subr.bf16.mxu0 0
  %675 = vmatpush1.bf16.msra.mxu0 %v505
  %676 = vmatprep.subr.bf16.mxu0 0
  %677 = vmatpush1.bf16.msra.mxu0 %v504
  %678 = vmatprep.subr.bf16.mxu0 0
  %679 = vmatpush1.bf16.msra.mxu0 %v503
  %680 = vmatprep.subr.bf16.mxu0 0
  %681 = vmatpush1.bf16.msra.mxu0 %v502
  %682 = vmatprep.subr.bf16.mxu0 0
  %683 = vmatpush1.bf16.msra.mxu0 %v501
  %684 = vmatprep.subr.bf16.mxu0 0
  %685 = vmatpush1.bf16.msra.mxu0 %v500
  %686 = vmatprep.subr.bf16.mxu0 0
  %687 = vmatpush1.bf16.msra.mxu0 %v499
  %688 = vmatprep.subr.bf16.mxu0 0
  %689 = vmatpush1.bf16.msra.mxu0 %v498
  %690 = vmatprep.subr.bf16.mxu0 0
  %691 = vmatpush2.bf16.msra.mxu0 %v513
  %692 = vmatprep.subr.bf16.mxu0 0
  %693 = vmatpush2.bf16.msra.mxu0 %v512
  %694 = vmatprep.subr.bf16.mxu0 0
  %695 = vmatpush2.bf16.msra.mxu0 %v511
  %696 = vmatprep.subr.bf16.mxu0 0
  %697 = vmatpush2.bf16.msra.mxu0 %v510
  %698 = vmatprep.subr.bf16.mxu0 0
  %699 = vmatpush2.bf16.msra.mxu0 %v509
  %700 = vmatprep.subr.bf16.mxu0 0
  %701 = vmatpush2.bf16.msra.mxu0 %v508
  %702 = vmatprep.subr.bf16.mxu0 0
  %703 = vmatpush2.bf16.msra.mxu0 %v507
  %704 = vmatprep.subr.bf16.mxu0 0
  %705 = vmatpush2.bf16.msra.mxu0 %v506
  %706 = vmatprep.mubr.bf16.mxu0 %v72
  %707 = vmatmul.mubr.bf16.gmra.mxu0 %v71
  %v708 = vpop.f32.mrf.mxu0
  %v709 = vadd.f32 %v669, %v708
  %v710 = vpop.f32.mrf.mxu0
  %v711 = vpop.f32.mrf.mxu0
  %v712 = vpop.f32.mrf.mxu0
  %713 = vdwg.mxu0
  %714 = vmatprep.subr.bf16.mxu0 0
  %715 = vmatpush1.bf16.msra.mxu0 %v521
  %716 = vmatprep.subr.bf16.mxu0 0
  %717 = vmatpush1.bf16.msra.mxu0 %v520
  %718 = vmatprep.subr.bf16.mxu0 0
  %719 = vmatpush1.bf16.msra.mxu0 %v519
  %720 = vmatprep.subr.bf16.mxu0 0
  %721 = vmatpush1.bf16.msra.mxu0 %v518
  %722 = vmatprep.subr.bf16.mxu0 0
  %723 = vmatpush1.bf16.msra.mxu0 %v517
  %724 = vmatprep.subr.bf16.mxu0 0
  %725 = vmatpush1.bf16.msra.mxu0 %v516
  %726 = vmatprep.subr.bf16.mxu0 0
  %727 = vmatpush1.bf16.msra.mxu0 %v515
  %728 = vmatprep.subr.bf16.mxu0 0
  %729 = vmatpush1.bf16.msra.mxu0 %v514
  %730 = vmatprep.subr.bf16.mxu0 0
  %731 = vmatpush2.bf16.msra.mxu0 %v529
  %732 = vmatprep.subr.bf16.mxu0 0
  %733 = vmatpush2.bf16.msra.mxu0 %v528
  %734 = vmatprep.subr.bf16.mxu0 0
  %735 = vmatpush2.bf16.msra.mxu0 %v527
  %736 = vmatprep.subr.bf16.mxu0 0
  %737 = vmatpush2.bf16.msra.mxu0 %v526
  %738 = vmatprep.subr.bf16.mxu0 0
  %739 = vmatpush2.bf16.msra.mxu0 %v525
  %740 = vmatprep.subr.bf16.mxu0 0
  %741 = vmatpush2.bf16.msra.mxu0 %v524
  %742 = vmatprep.subr.bf16.mxu0 0
  %743 = vmatpush2.bf16.msra.mxu0 %v523
  %744 = vmatprep.subr.bf16.mxu0 0
  %745 = vmatpush2.bf16.msra.mxu0 %v522
  %746 = vmatprep.mubr.bf16.mxu0 %v74
  %747 = vmatmul.mubr.bf16.gmra.mxu0 %v73
  %v748 = vpop.f32.mrf.mxu0
  %v749 = vadd.f32 %v709, %v748
  %v750 = vpop.f32.mrf.mxu0
  %v751 = vpop.f32.mrf.mxu0
  %v752 = vpop.f32.mrf.mxu0
  %753 = vdwg.mxu0
  %v754 = vmax.f32 %v749, 0.0
  %v755 = vpack.c.bf16 %v754, %v754
  %v756 = vld [vmem:[%s3] sm:$0xf]
  %v757 = vld [vmem:[%s3 + $0x4] sm:$0xf]
  %v758 = vld [vmem:[%s3 + $0x8] sm:$0xf]
  %v759 = vld [vmem:[%s3 + $0xc] sm:$0xf]
  %v760 = vld [vmem:[%s3 + $0x10] sm:$0xf]
  %v761 = vld [vmem:[%s3 + $0x14] sm:$0xf]
  %v762 = vld [vmem:[%s3 + $0x18] sm:$0xf]
  %v763 = vld [vmem:[%s3 + $0x1c] sm:$0xf]
  %v764 = vld [vmem:[%s3 + $0x20] sm:$0xf]
  %v765 = vld [vmem:[%s3 + $0x24] sm:$0xf]
  %v766 = vld [vmem:[%s3 + $0x28] sm:$0xf]
  %v767 = vld [vmem:[%s3 + $0x2c] sm:$0xf]
  %v768 = vld [vmem:[%s3 + $0x30] sm:$0xf]
  %v769 = vld [vmem:[%s3 + $0x34] sm:$0xf]
  %v770 = vld [vmem:[%s3 + $0x38] sm:$0xf]
  %v771 = vld [vmem:[%s3 + $0x3c] sm:$0xf]
  %v772 = vld [vmem:[%s4] sm:$0x1]
  %v774 = vlaneseq
  %v775 = vshrl.u32 %v774, 7
  %v776 = vsub.s32 0, %v775
  %v777 = vrot.slane %v772, %v776
  %v795 = vunpack.c.l.b16 %v756
  %v796 = vunpack.c.l.b16 %v757
  %v797 = vunpack.c.l.b16 %v758
  %v798 = vunpack.c.l.b16 %v759
  %v799 = vunpack.c.l.b16 %v760
  %v800 = vunpack.c.l.b16 %v761
  %v801 = vunpack.c.l.b16 %v762
  %v802 = vunpack.c.l.b16 %v763
  %v803 = vunpack.c.l.b16 %v764
  %v804 = vunpack.c.l.b16 %v765
  %v805 = vunpack.c.l.b16 %v766
  %v806 = vunpack.c.l.b16 %v767
  %v807 = vunpack.c.l.b16 %v768
  %v808 = vunpack.c.l.b16 %v769
  %v809 = vunpack.c.l.b16 %v770
  %v810 = vunpack.c.l.b16 %v771
  %v811 = vpack.c.b16 %v796, %v795
  %v812 = vpack.c.b16 %v798, %v797
  %v813 = vpack.c.b16 %v800, %v799
  %v814 = vpack.c.b16 %v802, %v801
  %v815 = vpack.c.b16 %v804, %v803
  %v816 = vpack.c.b16 %v806, %v805
  %v817 = vpack.c.b16 %v808, %v807
  %v818 = vpack.c.b16 %v810, %v809
  %827 = vmatprep.subr.bf16.mxu0 0
  %828 = vmatpush1.bf16.msra.mxu0 %v818
  %829 = vmatprep.subr.bf16.mxu0 0
  %830 = vmatpush1.bf16.msra.mxu0 %v817
  %831 = vmatprep.subr.bf16.mxu0 0
  %832 = vmatpush1.bf16.msra.mxu0 %v816
  %833 = vmatprep.subr.bf16.mxu0 0
  %834 = vmatpush1.bf16.msra.mxu0 %v815
  %835 = vmatprep.subr.bf16.mxu0 0
  %836 = vmatpush1.bf16.msra.mxu0 %v814
  %837 = vmatprep.subr.bf16.mxu0 0
  %838 = vmatpush1.bf16.msra.mxu0 %v813
  %839 = vmatprep.subr.bf16.mxu0 0
  %840 = vmatpush1.bf16.msra.mxu0 %v812
  %841 = vmatprep.subr.bf16.mxu0 0
  %842 = vmatpush1.bf16.msra.mxu0 %v811
  %843 = vmatprep.subr.bf16.mxu0 0
  %844 = vmatpush2.bf16.msra.mxu0 0
  %845 = vmatprep.subr.bf16.mxu0 0
  %846 = vmatpush2.bf16.msra.mxu0 0
  %847 = vmatprep.subr.bf16.mxu0 0
  %848 = vmatpush2.bf16.msra.mxu0 0
  %849 = vmatprep.subr.bf16.mxu0 0
  %850 = vmatpush2.bf16.msra.mxu0 0
  %851 = vmatprep.subr.bf16.mxu0 0
  %852 = vmatpush2.bf16.msra.mxu0 0
  %853 = vmatprep.subr.bf16.mxu0 0
  %854 = vmatpush2.bf16.msra.mxu0 0
  %855 = vmatprep.subr.bf16.mxu0 0
  %856 = vmatpush2.bf16.msra.mxu0 0
  %857 = vmatprep.subr.bf16.mxu0 0
  %858 = vmatpush2.bf16.msra.mxu0 0
  %859 = vmatprep.mubr.bf16.mxu0 0
  %860 = vmatmul.mubr.bf16.gmra.mxu0 %v755
  %v861 = vpop.f32.mrf.mxu0
  %v862 = vadd.f32 %v777, %v861
  %v863 = vpop.f32.mrf.mxu0
  %v864 = vpop.f32.mrf.mxu0
  %v865 = vpop.f32.mrf.mxu0
  %866 = vdwg.mxu0
  %v867 = vpack.c.bf16 %v862, %v862
  %868 = vst [vmem:[%s5] sm:$0x1] %v867
  // Predicated region
  $region22: #{mlp_forward.1} parent=0 // pred_check
    _
  $region23: #{mlp_forward.1} parent=0 // pred_check_branch
    %870 = sbr.rel (0) target = $region25
  $region24: #{mlp_forward.1} parent=0 // pred_region
    _
  $region25: #{mlp_forward.1} parent=0 // pred_fallthru
    _
  // Predicated region
  $region26: #{mlp_forward.1} parent=0 // pred_check
    _
  $region27: #{mlp_forward.1} parent=0 // pred_check_branch
    %872 = sbr.rel (0) target = $region29
  $region28: #{mlp_forward.1} parent=0 // pred_region
    _
  $region29: #{mlp_forward.1} parent=0 // pred_fallthru
    _

</llo_original>
